<compile_context>
chip_gen: v5e
topology: v5e:2x2
jax: 0.10.0
libtpu: 0.0.40
codegen_flags: <defaults>
</compile_context>

<pallas_src>
import math

import jax
import jax.numpy as jnp
from jax import lax
from jax.experimental import pallas as pl
from jax.experimental.pallas import tpu as pltpu

_EPS = 1e-12  # torch.nn.functional.normalize default eps (clamp on the norm)


def _round_up(x, m):
    return (x + m - 1) // m * m


def _cosine_linear_kernel(sigma_ref, x_ref, w_ref, winv_ref, o_ref):
    # Single-K-block kernel. x tile: (tm, in_f), W tile: (tn, in_f),
    # winv tile: (1, tn), out tile: (tm, tn).
    x = x_ref[...]

    # Per-row inverse L2 norm of x in f32, sigma folded in (rsqrt -> EUP).
    xf = x.astype(jnp.float32)
    x_ss = jnp.sum(xf * xf, axis=-1, keepdims=True)                      # (tm, 1)
    x_scale = sigma_ref[0] * lax.rsqrt(jnp.maximum(x_ss, _EPS * _EPS))   # (tm, 1)

    # MXU matmul on raw-dtype operands, contracting the last dims (NT form),
    # f32 accumulation.
    acc = lax.dot_general(
        x, w_ref[...],
        dimension_numbers=(((1,), (1,)), ((), ())),
        preferred_element_type=jnp.float32,
    )                                                                     # (tm, tn)

    # Fused epilogue: row scale (sigma / ||x||) and column scale (1 / ||w||).
    o_ref[...] = (acc * x_scale * winv_ref[...]).astype(o_ref.dtype)


def _cosine_linear_kernel_ktiled(sigma_ref, x_ref, w_ref, winv_ref, o_ref,
                                 acc_ref, xss_ref):
    # K-tiled kernel. x tile: (tm, tk), W tile: (tn, tk), winv: (1, tn),
    # out: (tm, tn). acc_ref/xss_ref are f32 VMEM accumulators resident across
    # the innermost ("arbitrary") K grid axis.
    k = pl.program_id(2)

    @pl.when(k == 0)
    def _():
        acc_ref[...] = jnp.zeros_like(acc_ref)
        xss_ref[...] = jnp.zeros_like(xss_ref)

    x = x_ref[...]
    xf = x.astype(jnp.float32)
    xss_ref[...] += jnp.sum(xf * xf, axis=-1, keepdims=True)              # (tm, 1)
    acc_ref[...] += lax.dot_general(
        x, w_ref[...],
        dimension_numbers=(((1,), (1,)), ((), ())),
        preferred_element_type=jnp.float32,
    )                                                                     # (tm, tn)

    @pl.when(k == pl.num_programs(2) - 1)
    def _():
        x_scale = sigma_ref[0] * lax.rsqrt(jnp.maximum(xss_ref[...], _EPS * _EPS))
        o_ref[...] = (acc_ref[...] * x_scale * winv_ref[...]).astype(o_ref.dtype)


def cosine_linear(x, weight, sigma, *, tm=256, tn=256, tk=None,
                  vmem_budget_bytes=28 * 1024 * 1024):
    """x: (B, in_f), weight: (out_f, in_f), sigma: (1,) scalar array."""
    B, in_f = x.shape
    out_f, in_f_w = weight.shape
    assert in_f == in_f_w

    # Cheap O(out_f * in_f) prologue, done once: per-output-row inverse L2 norm
    # of W, laid out lane-major as (1, out_f).
    wf = weight.astype(jnp.float32)
    w_inv = lax.rsqrt(
        jnp.maximum(jnp.sum(wf * wf, axis=1, keepdims=True), _EPS * _EPS)
    ).reshape(1, out_f)

    # Tile sizes: tm multiple of 8 (sublanes), tn multiple of 128 (lane-dense stores).
    tm = min(tm, _round_up(B, 8))
    tn = min(tn, _round_up(out_f, 128))

    itemsize = jnp.dtype(x.dtype).itemsize
    out_itemsize = itemsize

    # Double-buffered VMEM footprint if in_features is kept whole per block.
    single_k_bytes = (2 * (tm + tn) * in_f * itemsize   # x, W tiles (double-buffered)
                      + 2 * tm * tn * out_itemsize      # out tile (double-buffered)
                      + 2 * tn * 4)                     # 1/||w|| row
    use_ktile = (tk is not None) or (single_k_bytes > vmem_budget_bytes)

    b_p = _round_up(B, tm)
    out_p = _round_up(out_f, tn)

    if not use_ktile:
        in_p = in_f
    else:
        if tk is None:
            # Largest lane-aligned K chunk keeping double-buffered x/W tiles plus
            # the f32 accumulators inside the VMEM budget.
            fixed = (tm * tn * 4 + tm * 128 * 4           # acc + xss scratch
                     + 2 * tm * tn * out_itemsize + 2 * tn * 4)
            avail = max(vmem_budget_bytes - fixed, 2 * (tm + tn) * itemsize * 128)
            tk = avail // (2 * (tm + tn) * itemsize)
        tk = max(128, (tk // 128) * 128)
        tk = min(tk, _round_up(in_f, 128))
        in_p = _round_up(in_f, tk)

    # Zero-padding is exact for this op (zero rows/cols contribute nothing to the
    # dots and to the sums of squares) and is sliced off afterwards.
    if (b_p, in_p) != (B, in_f):
        x = jnp.pad(x, ((0, b_p - B), (0, in_p - in_f)))
    if (out_p, in_p) != (out_f, in_f):
        weight = jnp.pad(weight, ((0, out_p - out_f), (0, in_p - in_f)))
    if out_p != out_f:
        w_inv = jnp.pad(w_inv, ((0, 0), (0, out_p - out_f)))

    if not use_ktile:
        grid = (out_p // tn, b_p // tm)   # W tile resident across the inner batch sweep
        out = pl.pallas_call(
            _cosine_linear_kernel,
            out_shape=jax.ShapeDtypeStruct((b_p, out_p), x.dtype),
            grid_spec=pltpu.PrefetchScalarGridSpec(
                num_scalar_prefetch=0,
                grid=grid,
                in_specs=[
                    pl.BlockSpec(memory_space=pltpu.SMEM),            # sigma scalar
                    pl.BlockSpec((tm, in_p), lambda j, i: (i, 0)),    # x tile
                    pl.BlockSpec((tn, in_p), lambda j, i: (j, 0)),    # W tile
                    pl.BlockSpec((1, tn), lambda j, i: (0, j)),       # 1/||w|| row
                ],
                out_specs=pl.BlockSpec((tm, tn), lambda j, i: (i, j)),
            ),
            compiler_params=pltpu.CompilerParams(
                dimension_semantics=("parallel", "parallel"),
            ),
        )(sigma, x, weight, w_inv)
    else:
        grid = (out_p // tn, b_p // tm, in_p // tk)   # K innermost ("arbitrary")
        out = pl.pallas_call(
            _cosine_linear_kernel_ktiled,
            out_shape=jax.ShapeDtypeStruct((b_p, out_p), x.dtype),
            grid_spec=pltpu.PrefetchScalarGridSpec(
                num_scalar_prefetch=0,
                grid=grid,
                in_specs=[
                    pl.BlockSpec(memory_space=pltpu.SMEM),               # sigma scalar
                    pl.BlockSpec((tm, tk), lambda j, i, k: (i, k)),      # x tile
                    pl.BlockSpec((tn, tk), lambda j, i, k: (j, k)),      # W tile
                    pl.BlockSpec((1, tn), lambda j, i, k: (0, j)),       # 1/||w|| row
                ],
                out_specs=pl.BlockSpec((tm, tn), lambda j, i, k: (i, j)),
                scratch_shapes=[
                    pltpu.VMEM((tm, tn), jnp.float32),   # matmul accumulator
                    pltpu.VMEM((tm, 1), jnp.float32),    # x sum-of-squares accumulator
                ],
            ),
            compiler_params=pltpu.CompilerParams(
                dimension_semantics=("parallel", "parallel", "arbitrary"),
            ),
        )(sigma, x, weight, w_inv)

    if (b_p, out_p) != (B, out_f):
        out = out[:B, :out_f]
    return out


def cosine_linear_ref(x, weight, sigma):
    """Pure-JAX reference mirroring the PyTorch module (normalize-then-linear)."""
    xn = x / jnp.maximum(jnp.linalg.norm(x, axis=1, keepdims=True), _EPS)
    wn = weight / jnp.maximum(jnp.linalg.norm(weight, axis=1, keepdims=True), _EPS)
    return sigma[0] * jnp.dot(xn, wn.T, precision=lax.Precision.HIGHEST)


if __name__ == "__main__":
    key = jax.random.PRNGKey(0)
    k_x, k_w, k_x2, k_w2 = jax.random.split(key, 4)

    # Small shapes consistent with the module: batch=8, in_features=32, out_features=16.
    B, in_features, out_features = 8, 32, 16

    # Snap inputs to the bf16 grid so the check is insensitive to the MXU's
    # bf16-pass decomposition of f32 matmuls.
    x = jax.random.normal(k_x, (B, in_features), dtype=jnp.float32)
    x = x.astype(jnp.bfloat16).astype(jnp.float32)

    # Deterministic parameter init mirroring reset_parameters():
    #   weight ~ U(-stdv, stdv) with stdv = 1/sqrt(in_features); sigma = 1.0
    stdv = 1.0 / math.sqrt(in_features)
    weight = jax.random.uniform(
        k_w, (out_features, in_features), minval=-stdv, maxval=stdv, dtype=jnp.float32
    )
    weight = weight.astype(jnp.bfloat16).astype(jnp.float32)
    sigma = jnp.ones((1,), dtype=jnp.float32)

    out = jax.block_until_ready(cosine_linear(x, weight, sigma))
    ref = cosine_linear_ref(x, weight, sigma)
    assert out.shape == (B, out_features)
    assert jnp.allclose(out, ref, atol=1e-5, rtol=1e-5), "single-K path mismatch vs reference"

    # Also exercise the K-tiled accumulator path (forced tk) at a small shape.
    in_features2 = 384
    stdv2 = 1.0 / math.sqrt(in_features2)
    x2 = jax.random.normal(k_x2, (B, in_features2), dtype=jnp.float32)
    x2 = x2.astype(jnp.bfloat16).astype(jnp.float32)
    w2 = jax.random.uniform(
        k_w2, (out_features, in_features2), minval=-stdv2, maxval=stdv2, dtype=jnp.float32
    )
    w2 = w2.astype(jnp.bfloat16).astype(jnp.float32)

    out2 = jax.block_until_ready(cosine_linear(x2, w2, sigma, tk=128))
    ref2 = cosine_linear_ref(x2, w2, sigma)
    assert out2.shape == (B, out_features)
    assert jnp.allclose(out2, ref2, atol=5e-5, rtol=5e-5), "K-tiled path mismatch vs reference"

    print("KERNEL_OK")
</pallas_src>

<mosaic_0001>
module attributes {stable_mosaic.version = 11 : i64} {
  func.func @_cosine_linear_kernel(%arg0: i32, %arg1: i32, %arg2: memref<1xf32, #tpu.memory_space<smem>>, %arg3: memref<8x32xf32, #tpu.memory_space<vmem>>, %arg4: memref<128x32xf32, #tpu.memory_space<vmem>>, %arg5: memref<1x128xf32, #tpu.memory_space<vmem>>, %arg6: memref<8x128xf32, #tpu.memory_space<vmem>>) attributes {dimension_semantics = [#tpu.dimension_semantics<parallel>, #tpu.dimension_semantics<parallel>], iteration_bounds = array<i64: 1, 1>, scalar_prefetch = 0 : i64, scratch_operands = 0 : i64, tpu.core_type = #tpu.core_type<tc>, window_params = [{transform_indices = @transform_0, window_bounds = array<i64: 1>}, {transform_indices = @transform_1, window_bounds = array<i64: 8, 32>}, {transform_indices = @transform_2, window_bounds = array<i64: 128, 32>}, {transform_indices = @transform_3, window_bounds = array<i64: 1, 128>}, {transform_indices = @transform_4, window_bounds = array<i64: 8, 128>}]} {
    %c0 = arith.constant 0 : index
    %c0_0 = arith.constant 0 : index
    %0 = vector.load %arg3[%c0, %c0_0] : memref<8x32xf32, #tpu.memory_space<vmem>>, vector<8x32xf32>
    %1 = arith.mulf %0, %0 : vector<8x32xf32>
    %cst = arith.constant dense<0.000000e+00> : vector<8xf32>
    %2 = vector.multi_reduction <add>, %1, %cst [1] : vector<8x32xf32> to vector<8xf32>
    %3 = vector.shape_cast %2 : vector<8xf32> to vector<8x1xf32>
    %c0_1 = arith.constant 0 : index
    %4 = memref.load %arg2[%c0_1] : memref<1xf32, #tpu.memory_space<smem>>
    %cst_2 = arith.constant 1.000000e-24 : f32
    %5 = vector.broadcast %cst_2 : f32 to vector<8x1xf32>
    %6 = arith.maximumf %3, %5 : vector<8x1xf32>
    %7 = math.rsqrt %6 : vector<8x1xf32>
    %8 = vector.broadcast %4 : f32 to vector<8x1xf32>
    %9 = arith.mulf %8, %7 : vector<8x1xf32>
    %c0_3 = arith.constant 0 : index
    %c0_4 = arith.constant 0 : index
    %10 = vector.load %arg4[%c0_3, %c0_4] : memref<128x32xf32, #tpu.memory_space<vmem>>, vector<128x32xf32>
    %cst_5 = arith.constant dense<0.000000e+00> : vector<8x128xf32>
    %11 = tpu.matmul %0, %10, %cst_5 {dimension_numbers = #tpu.dot_dimension_numbers<[1], [1], [0], [0], [0, 0, 1, 0], [], []>} : vector<8x32xf32>, vector<128x32xf32>, vector<8x128xf32> -> vector<8x128xf32>
    %12 = vector.broadcast %9 : vector<8x1xf32> to vector<8x128xf32>
    %13 = arith.mulf %11, %12 : vector<8x128xf32>
    %c0_6 = arith.constant 0 : index
    %c0_7 = arith.constant 0 : index
    %14 = vector.load %arg5[%c0_6, %c0_7] : memref<1x128xf32, #tpu.memory_space<vmem>>, vector<1x128xf32>
    %15 = vector.broadcast %14 : vector<1x128xf32> to vector<8x128xf32>
    %16 = arith.mulf %13, %15 : vector<8x128xf32>
    %c0_8 = arith.constant 0 : index
    %c0_9 = arith.constant 0 : index
    %17 = vector.load %arg6[%c0_8, %c0_9] : memref<8x128xf32, #tpu.memory_space<vmem>>, vector<8x128xf32>
    tpu.vector_store %arg6[%c0_8, %c0_9], %16 {strides = array<i32>} : memref<8x128xf32, #tpu.memory_space<vmem>>, vector<8x128xf32>,
    return
  }
  func.func @transform_0(%arg0: i32, %arg1: i32) -> i32 {
    %c0_i32 = arith.constant 0 : i32
    %c0_i32_0 = arith.constant 0 : i32
    return %c0_i32 : i32
  }
  func.func @transform_1(%arg0: i32, %arg1: i32) -> (i32, i32) {
    %c0_i32 = arith.constant 0 : i32
    %c0_i32_0 = arith.constant 0 : i32
    return %arg1, %c0_i32 : i32, i32
  }
  func.func @transform_2(%arg0: i32, %arg1: i32) -> (i32, i32) {
    %c0_i32 = arith.constant 0 : i32
    %c0_i32_0 = arith.constant 0 : i32
    return %arg0, %c0_i32 : i32, i32
  }
  func.func @transform_3(%arg0: i32, %arg1: i32) -> (i32, i32) {
    %c0_i32 = arith.constant 0 : i32
    %c0_i32_0 = arith.constant 0 : i32
    return %c0_i32, %arg0 : i32, i32
  }
  func.func @transform_4(%arg0: i32, %arg1: i32) -> (i32, i32) {
    %c0_i32 = arith.constant 0 : i32
    return %arg1, %arg0 : i32, i32
  }
}

</mosaic_0001>

<llo_original>
// kernel: tpu_custom_call.1
$region0: #{tpu_custom_call.1}
  #allocation0 [shape = 'u32[]', space=smem, size = 0x4, offset = 0x4, fixed_abs, tag = 'smem constant byte address 0x4 - core index']
  #allocation1 [shape = 'u32[72,128]{1,0:T(1,128)}', space=vmem, size = 0x9000, scoped, tag = 'internal scratch']
  #allocation2 [shape = 'f32[1]{0:T(128)S(6)}', space=smem, size = 0x200, scoped, tag = 'scoped memory for tpu_custom_call.1']
  %s0 = inlined_call_operand.<no memory space> [shape: f32[1], index: 0, kind: input, shape index: {}]
  %s1 = inlined_call_operand.vmem [shape: f32[8,32], index: 1, kind: input, shape index: {}]
  %s2 = inlined_call_operand.vmem [shape: f32[128,32], index: 2, kind: input, shape index: {}]
  %s3 = inlined_call_operand.vmem [shape: f32[1,128], index: 3, kind: input, shape index: {}]
  %s4 = inlined_call_operand.hbm [shape: f32[8,128], index: 4, kind: output, shape index: {}]
  %s5 = sld [smem:[#allocation0]]
  $region26: #{tpu_custom_call.1} parent=0
    _
  %s7 = ssub.s32 1, %s5
  %s8 = scalar_select 0, %s7, %s5
  %9 = sst [smem:[#allocation2]] %s0
  $region1: #{tpu_custom_call.1} parent=0
    #allocation3 [shape = 'u8[4096]{0}', space=vmem, size = 0x1000, scoped, tag = 'output window, operand 0, single buffered']
    #allocation4 [shape = 's32[1]{0}', space=sflag, size = 0x4, scoped, tag = 'scoped memory for tpu_custom_call.1']
    %10 = vsyncpa [#allocation4], 0
    // Predicated region
    $region2: #{tpu_custom_call.1} parent=1 // pred_check
      _
    $region3: #{tpu_custom_call.1} parent=1 // pred_check_branch
      %12 = sbr.rel (0) target = $region5
    $region4: #{tpu_custom_call.1} parent=1 // pred_region
      _
    $region5: #{tpu_custom_call.1} parent=1 // pred_fallthru
      _
    // Predicated region
    $region6: #{tpu_custom_call.1} parent=1 // pred_check
      _
    $region7: #{tpu_custom_call.1} parent=1 // pred_check_branch
      %14 = sbr.rel (0) target = $region9
    $region8: #{tpu_custom_call.1} parent=1 // pred_region
      _
    $region9: #{tpu_custom_call.1} parent=1 // pred_fallthru
      _
    // Predicated region
    $region10: #{tpu_custom_call.1} parent=1 // pred_check
      _
    $region11: #{tpu_custom_call.1} parent=1 // pred_check_branch
      %16 = sbr.rel (0) target = $region13
    $region12: #{tpu_custom_call.1} parent=1 // pred_region
      _
    $region13: #{tpu_custom_call.1} parent=1 // pred_fallthru
      _
    // Predicated region
    $region14: #{tpu_custom_call.1} parent=1 // pred_check
      _
    $region15: #{tpu_custom_call.1} parent=1 // pred_check_branch
      %18 = sbr.rel (0) target = $region17
    $region16: #{tpu_custom_call.1} parent=1 // pred_region
      _
    $region17: #{tpu_custom_call.1} parent=1 // pred_fallthru
      _
    %v19 = vld [vmem:[%s1] sm:$0xff]
    %v20 = vmul.f32 %v19, %v19
    %vm21 = vcmask 261120
    %v22 = vsel %vm21, %v20, 0.0
    %23 = vadd.xlane.f32.xlu0 %v22
    %v24 = vpop.xlane.xlu0 %23
    %s25 = sld [smem:[#allocation2]]
    %v26 = vmax.f32 %v24, 1e-24
    %v27 = vrsqrt.pop %v26
    %v28 = vmul.f32 %v27, %v26
    %v29 = vmul.f32 %v28, %v27
    %v30 = vmul.f32 0.5, %v29
    %v31 = vsub.f32 1.5, %v30
    %v32 = vmul.f32 %v27, %v31
    %vm33 = vweird.f32 %v26
    %vm34 = vweird.f32 %v27
    %vm35 = vmor %vm33, %vm34
    %v36 = vsel %vm35, %v27, %v32
    %v37 = vstv %s25
    %v38 = vmul.f32 %v37, %v36
    %v39 = vld [vmem:[%s2] sm:$0xff]
    %v40 = vld [vmem:[%s2 + $0x8] sm:$0xff]
    %v41 = vld [vmem:[%s2 + $0x10] sm:$0xff]
    %v42 = vld [vmem:[%s2 + $0x18] sm:$0xff]
    %v43 = vld [vmem:[%s2 + $0x20] sm:$0xff]
    %v44 = vld [vmem:[%s2 + $0x28] sm:$0xff]
    %v45 = vld [vmem:[%s2 + $0x30] sm:$0xff]
    %v46 = vld [vmem:[%s2 + $0x38] sm:$0xff]
    %v47 = vld [vmem:[%s2 + $0x40] sm:$0xff]
    %v48 = vld [vmem:[%s2 + $0x48] sm:$0xff]
    %v49 = vld [vmem:[%s2 + $0x50] sm:$0xff]
    %v50 = vld [vmem:[%s2 + $0x58] sm:$0xff]
    %v51 = vld [vmem:[%s2 + $0x60] sm:$0xff]
    %v52 = vld [vmem:[%s2 + $0x68] sm:$0xff]
    %v53 = vld [vmem:[%s2 + $0x70] sm:$0xff]
    %v54 = vld [vmem:[%s2 + $0x78] sm:$0xff]
    %v56 = vsel %vm21, %v19, 0
    %v59 = vsel %vm21, %v39, 0
    %v62 = vsel %vm21, %v40, 0
    %v65 = vsel %vm21, %v41, 0
    %v68 = vsel %vm21, %v42, 0
    %v71 = vsel %vm21, %v43, 0
    %v74 = vsel %vm21, %v44, 0
    %v77 = vsel %vm21, %v45, 0
    %v80 = vsel %vm21, %v46, 0
    %v83 = vsel %vm21, %v47, 0
    %v86 = vsel %vm21, %v48, 0
    %v89 = vsel %vm21, %v49, 0
    %v92 = vsel %vm21, %v50, 0
    %v95 = vsel %vm21, %v51, 0
    %v98 = vsel %vm21, %v52, 0
    %v101 = vsel %vm21, %v53, 0
    %v104 = vsel %vm21, %v54, 0
    %106 = vmatpush.xpose.msra.mxu0 %v104
    %107 = vmatpush.xpose.msra.mxu0 %v101
    %108 = vmatpush.xpose.msra.mxu0 %v98
    %109 = vmatpush.xpose.msra.mxu0 %v95
    %110 = vmatpush.xpose.msra.mxu0 %v92
    %111 = vmatpush.xpose.msra.mxu0 %v89
    %112 = vmatpush.xpose.msra.mxu0 %v86
    %113 = vmatpush.xpose.msra.mxu0 %v83
    %114 = vmatpush.xpose.msra.mxu0 %v80
    %115 = vmatpush.xpose.msra.mxu0 %v77
    %116 = vmatpush.xpose.msra.mxu0 %v74
    %117 = vmatpush.xpose.msra.mxu0 %v71
    %118 = vmatpush.xpose.msra.mxu0 %v68
    %119 = vmatpush.xpose.msra.mxu0 %v65
    %120 = vmatpush.xpose.msra.mxu0 %v62
    %121 = vmatpush.xpose.msra.mxu0 %v59
    %122 = vmatmul.f32.gmra.mxu0 %v56
    %v123 = vpop.f32.mrf.mxu0
    %v124 = vadd.f32 0.0, %v123
    %125 = vdwg.mxu0
    %v126 = vmul.f32 %v124, %v38
    %v127 = vld [vmem:[%s3] sm:$0x1]
    %v129 = vperm.slane %v127, 0
    %v131 = vmul.f32 %v126, %v129
    %132 = vst [vmem:[#allocation3] sm:$0xff] %v131
    // Predicated region
    $region18: #{tpu_custom_call.1} parent=1 // pred_check
      _
    $region19: #{tpu_custom_call.1} parent=1 // pred_check_branch
      %134 = sbr.rel (0) target = $region21
    $region20: #{tpu_custom_call.1} parent=1 // pred_region
      %136 = vsyncadd [#allocation4], 0
      %s138 = sshll.u32 [#allocation3], 4
      %s139 = int_to_ptr.vmem [resolvable:$true] %s138
      %s140 = sshll.u32 %s4, 4
      %s141 = int_to_ptr.hbm [resolvable:$true] %s140
      %143 = dma.vmem_to_hbm [thread:$0]  %s139, 128, %s141, [#allocation4]
    $region21: #{tpu_custom_call.1} parent=1 // pred_fallthru
      _
    // Predicated region
    $region22: #{tpu_custom_call.1} parent=1 // pred_check
      _
    $region23: #{tpu_custom_call.1} parent=1 // pred_check_branch
      %145 = sbr.rel (0) target = $region25
    $region24: #{tpu_custom_call.1} parent=1 // pred_region
      %147 = dma.done [#allocation4], 128
    $region25: #{tpu_custom_call.1} parent=1 // pred_fallthru
      _
    %148 = vsyncpa [#allocation4], 1

</llo_original>
